<compile_context>
chip_gen: v7x
topology: tpu7x:2x2x1
jax: 0.10.0
libtpu: 0.0.40
codegen_flags: <defaults>
</compile_context>

<pallas_src>
import functools

import jax
import jax.numpy as jnp
from jax.experimental import pallas as pl
from jax.experimental.pallas import tpu as pltpu

LEAKY_SLOPE = 0.2
BN_EPS = 1e-5


# ------------------------------ Pallas kernel -------------------------------

def _encode_block_kernel(x_ref, w_ref, p_ref, o_ref, sum_ref, sq_ref, ycache_ref,
                         *, cache_y, has_bias, m_total, m_padded, tm):
    # x_ref: [tm, Kp] bf16 patches        w_ref: [Kp, Cp] bf16 weights
    # p_ref: [8, Cp] f32 (row 0 bias, row 1 gamma, row 2 beta; zero-padded)
    # o_ref: [tm, Cp] out dtype           sum_ref/sq_ref: [1, Cp] f32 scratch
    # ycache_ref: [Mp, Cp] bf16 scratch (or tiny dummy when cache_y=False)
    phase = pl.program_id(0)
    i = pl.program_id(1)
    pad_rows = m_padded - m_total            # static
    inv_m = jnp.float32(1.0 / m_total)

    def conv_act():
        y = jnp.dot(x_ref[...], w_ref[...], preferred_element_type=jnp.float32)
        if has_bias:
            y = y + p_ref[0:1, :]
        return jnp.where(y >= 0.0, y, LEAKY_SLOPE * y)

    def valid_mask():
        row = i * tm + jax.lax.broadcasted_iota(jnp.int32, (tm, 1), 0)
        return row < m_total

    if cache_y:
        # -------- phase 0: conv + LeakyReLU once, cache y, channel sums -----
        @pl.when(phase == 0)
        def _phase0():
            y = conv_act()

            @pl.when(i == 0)
            def _init():
                sum_ref[...] = jnp.zeros_like(sum_ref)
                sq_ref[...] = jnp.zeros_like(sq_ref)

            ys = y
            if has_bias and pad_rows > 0:
                # With a bias, padded patch rows are not exactly zero.
                ys = jnp.where(valid_mask(), y, 0.0)
            sum_ref[...] += jnp.sum(ys, axis=0, keepdims=True)

            off = pl.multiple_of(i * tm, tm)
            ycache_ref[pl.ds(off, tm), :] = y.astype(ycache_ref.dtype)

        # -------- phase 1: centered sum-of-squares from the cached y --------
        @pl.when(phase == 1)
        def _phase1():
            off = pl.multiple_of(i * tm, tm)
            y = ycache_ref[pl.ds(off, tm), :].astype(jnp.float32)
            mean = sum_ref[...] * inv_m
            d = y - mean
            if pad_rows > 0:
                d = jnp.where(valid_mask(), d, 0.0)
            sq_ref[...] += jnp.sum(d * d, axis=0, keepdims=True)

        # -------- phase 2: normalize from the cached y and store -------------
        @pl.when(phase == 2)
        def _phase2():
            off = pl.multiple_of(i * tm, tm)
            y = ycache_ref[pl.ds(off, tm), :].astype(jnp.float32)
            mean = sum_ref[...] * inv_m
            var = sq_ref[...] * inv_m          # biased (training-mode) variance
            scale = jax.lax.rsqrt(var + BN_EPS) * p_ref[1:2, :]
            shift = p_ref[2:3, :] - mean * scale
            o_ref[...] = (y * scale + shift).astype(o_ref.dtype)
    else:
        # Fallback (y-cache too large for VMEM): 2-phase recompute kernel.
        y = conv_act()

        @pl.when(phase == 0)
        def _stats():
            @pl.when(i == 0)
            def _init():
                sum_ref[...] = jnp.zeros_like(sum_ref)
                sq_ref[...] = jnp.zeros_like(sq_ref)

            ys = y
            if has_bias and pad_rows > 0:
                ys = jnp.where(valid_mask(), y, 0.0)
            sum_ref[...] += jnp.sum(ys, axis=0, keepdims=True)
            sq_ref[...] += jnp.sum(ys * ys, axis=0, keepdims=True)

        @pl.when(phase == 1)
        def _normalize():
            mean = sum_ref[...] * inv_m
            var = jnp.maximum(sq_ref[...] * inv_m - mean * mean, 0.0)
            scale = jax.lax.rsqrt(var + BN_EPS) * p_ref[1:2, :]
            shift = p_ref[2:3, :] - mean * scale
            o_ref[...] = (y * scale + shift).astype(o_ref.dtype)


# ------------------------------- JAX wrapper ---------------------------------

def _round_up(x, m):
    return (x + m - 1) // m * m


def _im2col(x_nchw, kh, kw, stride, pad, dtype=jnp.bfloat16):
    """Patch matrix [N*OH*OW, Cin*kh*kw], K ordered (Cin, kh, kw) like torch."""
    N, C, H, W = x_nchw.shape
    xp = jnp.pad(x_nchw.astype(dtype), ((0, 0), (0, 0), (pad, pad), (pad, pad)))
    OH = (H + 2 * pad - kh) // stride + 1
    OW = (W + 2 * pad - kw) // stride + 1
    cols = []
    for i in range(kh):
        for j in range(kw):
            cols.append(xp[:, :, i:i + stride * OH:stride, j:j + stride * OW:stride])
    patches = jnp.stack(cols, axis=2)            # [N, C, kh*kw, OH, OW]
    patches = patches.transpose(0, 3, 4, 1, 2)   # [N, OH, OW, C, kh*kw]
    return patches.reshape(N * OH * OW, C * kh * kw), N, OH, OW


def encode_block_forward(x_nchw, weight, bias=None, gamma=None, beta=None,
                         stride=2, pad=1, block_m=256, out_dtype=jnp.bfloat16):
    """Conv2d(k=4) -> LeakyReLU(0.2) -> BatchNorm2d (training-mode batch stats)."""
    cout, cin, kh, kw = weight.shape
    patches, N, OH, OW = _im2col(x_nchw, kh, kw, stride, pad, dtype=jnp.bfloat16)
    M, K = patches.shape

    Kp = _round_up(K, 128)                               # lane-dense contraction
    Cp = _round_up(cout, 128)                            # lane-dense output dim
    tm = min(_round_up(block_m, 16), _round_up(M, 16))   # M tile, mult. of 16
    Mp = _round_up(M, tm)
    n_tiles = Mp // tm

    # Padded bf16 operands built in a single pad op (no zeros+set HBM round trip).
    patches_p = jnp.pad(patches, ((0, Mp - M), (0, Kp - K)))
    w_mat = weight.reshape(cout, K).T.astype(jnp.bfloat16)        # [K, Cout]
    w_p = jnp.pad(w_mat, ((0, Kp - K), (0, Cp - cout)))

    # Merged per-channel params: row 0 = bias, row 1 = gamma, row 2 = beta.
    has_bias = bias is not None
    params = jnp.zeros((8, cout), jnp.float32)
    if has_bias:
        params = params.at[0].set(bias.astype(jnp.float32))
    params = params.at[1].set(
        (jnp.ones((cout,), jnp.float32) if gamma is None else gamma.astype(jnp.float32)))
    params = params.at[2].set(
        (jnp.zeros((cout,), jnp.float32) if beta is None else beta.astype(jnp.float32)))
    params = jnp.pad(params, ((0, 0), (0, Cp - cout)))

    # ---- VMEM budget: y-cache if it fits; explicit vmem_limit_bytes. --------
    out_bytes = jnp.dtype(out_dtype).itemsize
    base_vmem = (2 * tm * Kp * 2          # patch tile, double buffered, bf16
                 + 2 * Kp * Cp * 2        # weights (counted double buffered)
                 + 2 * 8 * Cp * 4         # params
                 + 2 * tm * Cp * out_bytes  # output tile
                 + 2 * 8 * Cp * 4)        # sum/sq scratch (8-sublane padded)
    cache_bytes = Mp * Cp * 2
    cache_y = (base_vmem + cache_bytes) <= (40 << 20)   # keep headroom on v7x (64 MiB)
    vmem_need = base_vmem + (cache_bytes if cache_y else 0)
    vmem_limit = int(min(max(2 * vmem_need + (4 << 20), 32 << 20), 64 << 20))

    n_phases = 3 if cache_y else 2
    if cache_y:
        # Patch tile only streamed during phase 0; output only written in phase 2.
        x_map = lambda p, i: (jnp.where(p == 0, i, 0), 0)
        o_map = lambda p, i: (jnp.where(p == 2, i, 0), 0)
        ycache_shape = (Mp, Cp)
    else:
        x_map = lambda p, i: (i, 0)
        o_map = lambda p, i: (i * p, 0)
        ycache_shape = (8, 128)           # unused dummy
    const_map = lambda p, i: (0, 0)

    kernel = functools.partial(_encode_block_kernel, cache_y=cache_y,
                               has_bias=has_bias, m_total=M, m_padded=Mp, tm=tm)

    out_flat = pl.pallas_call(
        kernel,
        out_shape=jax.ShapeDtypeStruct((Mp, Cp), out_dtype),
        grid_spec=pltpu.PrefetchScalarGridSpec(
            num_scalar_prefetch=0,
            grid=(n_phases, n_tiles),                     # (phase, M tile)
            in_specs=[
                pl.BlockSpec((tm, Kp), x_map),            # patches (tiled)
                pl.BlockSpec((Kp, Cp), const_map),        # weights (resident)
                pl.BlockSpec((8, Cp), const_map),         # bias/gamma/beta
            ],
            out_specs=pl.BlockSpec((tm, Cp), o_map),
            scratch_shapes=[pltpu.VMEM((1, Cp), jnp.float32),      # channel sum
                            pltpu.VMEM((1, Cp), jnp.float32),      # centered sumsq
                            pltpu.VMEM(ycache_shape, jnp.bfloat16)],  # y cache
        ),
        compiler_params=pltpu.CompilerParams(
            # BN stats reduction spans all M tiles -> both axes sequential.
            dimension_semantics=("arbitrary", "arbitrary"),
            vmem_limit_bytes=vmem_limit),
    )(patches_p, w_p, params)

    # NOTE: for chained EncodeBlocks, stay NHWC and skip this transpose; it is
    # kept here to match the torch module's NCHW interface.
    out = out_flat[:M, :cout].reshape(N, OH, OW, cout).transpose(0, 3, 1, 2)
    return out


# ------------------------------ reference (XLA) ------------------------------

def _reference(x, w, b, gamma, beta, stride, pad):
    y = jax.lax.conv_general_dilated(
        x, w, window_strides=(stride, stride),
        padding=[(pad, pad), (pad, pad)],
        dimension_numbers=("NCHW", "OIHW", "NCHW"))
    y = y + b.reshape(1, -1, 1, 1)
    y = jnp.where(y >= 0, y, LEAKY_SLOPE * y)
    mean = jnp.mean(y, axis=(0, 2, 3), keepdims=True)
    var = jnp.mean((y - mean) ** 2, axis=(0, 2, 3), keepdims=True)   # biased
    y = (y - mean) * jax.lax.rsqrt(var + BN_EPS)
    return y * gamma.reshape(1, -1, 1, 1) + beta.reshape(1, -1, 1, 1)


# ---------------------------------- main -------------------------------------

if __name__ == "__main__":
    key = jax.random.PRNGKey(0)
    k_x, k_w, k_g, k_b = jax.random.split(key, 4)

    inner_nc, outer_nc = 4, 32
    N, H, W = 2, 16, 16
    x = jax.random.normal(k_x, (N, inner_nc, H, W), jnp.float32)
    weight = 0.05 * jax.random.normal(k_w, (outer_nc, inner_nc, 4, 4), jnp.float32)
    gamma = 1.0 + 0.1 * jax.random.normal(k_g, (outer_nc,), jnp.float32)
    beta = 0.1 * jax.random.normal(k_b, (outer_nc,), jnp.float32)
    # EncodeBlock default: use_bias=False -> conv bias is None.

    # block_m=48 exercises the multi-tile stats path AND the padded-row mask
    # (M=128 -> 3 tiles of 48 with 16 padded rows).
    out = encode_block_forward(x, weight, bias=None, gamma=gamma, beta=beta,
                               stride=2, pad=1, block_m=48)
    out = jax.block_until_ready(out)

    assert out.shape == (N, outer_nc, H // 2, W // 2), out.shape
    out32 = out.astype(jnp.float32)
    assert bool(jnp.all(jnp.isfinite(out32)))
    ref = _reference(x, weight, jnp.zeros((outer_nc,), jnp.float32),
                     gamma, beta, 2, 1)
    err = float(jnp.max(jnp.abs(out32 - ref)))
    assert bool(jnp.allclose(out32, ref, atol=3e-2, rtol=3e-2)), err
    print("KERNEL_OK")
</pallas_src>

<mosaic_0001>
module attributes {stable_mosaic.version = 11 : i64} {
  func.func @_encode_block_kernel(%arg0: i32, %arg1: i32, %arg2: memref<48x128xbf16, #tpu.memory_space<vmem>>, %arg3: memref<128x128xbf16, #tpu.memory_space<vmem>>, %arg4: memref<8x128xf32, #tpu.memory_space<vmem>>, %arg5: memref<48x128xbf16, #tpu.memory_space<vmem>>, %arg6: memref<1x128xf32, #tpu.memory_space<vmem>>, %arg7: memref<1x128xf32, #tpu.memory_space<vmem>>, %arg8: memref<144x128xbf16, #tpu.memory_space<vmem>>) attributes {dimension_semantics = [#tpu.dimension_semantics<arbitrary>, #tpu.dimension_semantics<arbitrary>], iteration_bounds = array<i64: 3, 3>, scalar_prefetch = 0 : i64, scratch_operands = 3 : i64, tpu.core_type = #tpu.core_type<tc>, window_params = [{transform_indices = @transform_0, window_bounds = array<i64: 48, 128>}, {pipeline_mode = #tpu.pipeline_mode<synchronous>, transform_indices = @transform_1, window_bounds = array<i64: 128, 128>}, {pipeline_mode = #tpu.pipeline_mode<synchronous>, transform_indices = @transform_2, window_bounds = array<i64: 8, 128>}, {transform_indices = @transform_3, window_bounds = array<i64: 48, 128>}]} {
    %c0_i32 = arith.constant 0 : i32
    %0 = arith.cmpi eq, %arg0, %c0_i32 : i32
    %1 = arith.extui %0 : i1 to i32
    %c0_i32_0 = arith.constant 0 : i32
    %2 = arith.cmpi ne, %1, %c0_i32_0 : i32
    scf.if %2 {
      %c0 = arith.constant 0 : index
      %c0_4 = arith.constant 0 : index
      %9 = vector.load %arg2[%c0, %c0_4] : memref<48x128xbf16, #tpu.memory_space<vmem>>, vector<48x128xbf16>
      %c0_5 = arith.constant 0 : index
      %c0_6 = arith.constant 0 : index
      %10 = vector.load %arg3[%c0_5, %c0_6] : memref<128x128xbf16, #tpu.memory_space<vmem>>, vector<128x128xbf16>
      %cst_7 = arith.constant dense<0.000000e+00> : vector<48x128xf32>
      %11 = tpu.matmul %9, %10, %cst_7 {dimension_numbers = #tpu.dot_dimension_numbers<[1], [0], [0], [1], [0, 0, 1, 1], [], []>} : vector<48x128xbf16>, vector<128x128xbf16>, vector<48x128xf32> -> vector<48x128xf32>
      %cst_8 = arith.constant 0.000000e+00 : f32
      %12 = vector.broadcast %cst_8 : f32 to vector<48x128xf32>
      %13 = arith.cmpf oge, %11, %12 : vector<48x128xf32>
      %cst_9 = arith.constant 2.000000e-01 : f32
      %14 = vector.broadcast %cst_9 : f32 to vector<48x128xf32>
      %15 = arith.mulf %14, %11 : vector<48x128xf32>
      %16 = arith.select %13, %11, %15 : vector<48x128xi1>, vector<48x128xf32>
      %c0_i32_10 = arith.constant 0 : i32
      %17 = arith.cmpi eq, %arg1, %c0_i32_10 : i32
      %18 = arith.extui %17 : i1 to i32
      %c0_i32_11 = arith.constant 0 : i32
      %19 = arith.cmpi ne, %18, %c0_i32_11 : i32
      scf.if %19 {
        %cst_18 = arith.constant 0.000000e+00 : f32
        %30 = vector.broadcast %cst_18 : f32 to vector<1x128xf32>
        %c0_19 = arith.constant 0 : index
        %c0_20 = arith.constant 0 : index
        %31 = vector.load %arg6[%c0_19, %c0_20] : memref<1x128xf32, #tpu.memory_space<vmem>>, vector<1x128xf32>
        tpu.vector_store %arg6[%c0_19, %c0_20], %30 {strides = array<i32>} : memref<1x128xf32, #tpu.memory_space<vmem>>, vector<1x128xf32>,
        %cst_21 = arith.constant 0.000000e+00 : f32
        %32 = vector.broadcast %cst_21 : f32 to vector<1x128xf32>
        %c0_22 = arith.constant 0 : index
        %c0_23 = arith.constant 0 : index
        %33 = vector.load %arg7[%c0_22, %c0_23] : memref<1x128xf32, #tpu.memory_space<vmem>>, vector<1x128xf32>
        tpu.vector_store %arg7[%c0_22, %c0_23], %32 {strides = array<i32>} : memref<1x128xf32, #tpu.memory_space<vmem>>, vector<1x128xf32>,
      } else {
      }
      %c0_12 = arith.constant 0 : index
      %c0_13 = arith.constant 0 : index
      %20 = vector.load %arg6[%c0_12, %c0_13] : memref<1x128xf32, #tpu.memory_space<vmem>>, vector<1x128xf32>
      %cst_14 = arith.constant dense<0.000000e+00> : vector<128xf32>
      %21 = vector.multi_reduction <add>, %16, %cst_14 [0] : vector<48x128xf32> to vector<128xf32>
      %22 = vector.shape_cast %21 : vector<128xf32> to vector<1x128xf32>
      %23 = arith.addf %20, %22 : vector<1x128xf32>
      %c0_15 = arith.constant 0 : index
      %c0_16 = arith.constant 0 : index
      %24 = vector.load %arg6[%c0_15, %c0_16] : memref<1x128xf32, #tpu.memory_space<vmem>>, vector<1x128xf32>
      tpu.vector_store %arg6[%c0_15, %c0_16], %23 {strides = array<i32>} : memref<1x128xf32, #tpu.memory_space<vmem>>, vector<1x128xf32>,
      %c48_i32 = arith.constant 48 : i32
      %25 = arith.muli %arg1, %c48_i32 : i32
      %26 = tpu.assume_multiple %25, 48 : i32
      %27 = arith.truncf %16 : vector<48x128xf32> to vector<48x128xbf16>
      %28 = arith.index_cast %26 : i32 to index
      %c0_17 = arith.constant 0 : index
      %29 = vector.load %arg8[%28, %c0_17] : memref<144x128xbf16, #tpu.memory_space<vmem>>, vector<48x128xbf16>
      tpu.vector_store %arg8[%28, %c0_17], %27 {strides = array<i32>} : memref<144x128xbf16, #tpu.memory_space<vmem>>, vector<48x128xbf16>,
    } else {
    }
    %c1_i32 = arith.constant 1 : i32
    %3 = arith.cmpi eq, %arg0, %c1_i32 : i32
    %4 = arith.extui %3 : i1 to i32
    %cst = arith.constant 7.812500e-03 : f32
    %c0_i32_1 = arith.constant 0 : i32
    %5 = arith.cmpi ne, %4, %c0_i32_1 : i32
    scf.if %5 {
      %c48_i32 = arith.constant 48 : i32
      %9 = arith.muli %arg1, %c48_i32 : i32
      %10 = tpu.assume_multiple %9, 48 : i32
      %11 = arith.index_cast %10 : i32 to index
      %c0 = arith.constant 0 : index
      %12 = vector.load %arg8[%11, %c0] : memref<144x128xbf16, #tpu.memory_space<vmem>>, vector<48x128xbf16>
      %13 = arith.extf %12 : vector<48x128xbf16> to vector<48x128xf32>
      %c0_4 = arith.constant 0 : index
      %c0_5 = arith.constant 0 : index
      %14 = vector.load %arg6[%c0_4, %c0_5] : memref<1x128xf32, #tpu.memory_space<vmem>>, vector<1x128xf32>
      %15 = vector.broadcast %cst : f32 to vector<1x128xf32>
      %16 = arith.mulf %14, %15 : vector<1x128xf32>
      %17 = vector.broadcast %16 : vector<1x128xf32> to vector<48x128xf32>
      %18 = arith.subf %13, %17 : vector<48x128xf32>
      %c48_i32_6 = arith.constant 48 : i32
      %19 = arith.muli %arg1, %c48_i32_6 : i32
      %20 = tpu.iota {dimensions = array<i32: 0>} : vector<48x1xi32>
      %21 = vector.broadcast %19 : i32 to vector<48x1xi32>
      %22 = arith.addi %21, %20 : vector<48x1xi32>
      %c128_i32 = arith.constant 128 : i32
      %23 = vector.broadcast %c128_i32 : i32 to vector<48x1xi32>
      %24 = arith.cmpi slt, %22, %23 : vector<48x1xi32>
      %cst_7 = arith.constant 0.000000e+00 : f32
      %25 = vector.shape_cast %24 : vector<48x1xi1> to vector<48x1xi1>
      %26 = vector.broadcast %25 : vector<48x1xi1> to vector<48x128xi1>
      %27 = vector.broadcast %cst_7 : f32 to vector<48x128xf32>
      %28 = arith.select %26, %18, %27 : vector<48x128xi1>, vector<48x128xf32>
      %c0_8 = arith.constant 0 : index
      %c0_9 = arith.constant 0 : index
      %29 = vector.load %arg7[%c0_8, %c0_9] : memref<1x128xf32, #tpu.memory_space<vmem>>, vector<1x128xf32>
      %30 = arith.mulf %28, %28 : vector<48x128xf32>
      %cst_10 = arith.constant dense<0.000000e+00> : vector<128xf32>
      %31 = vector.multi_reduction <add>, %30, %cst_10 [0] : vector<48x128xf32> to vector<128xf32>
      %32 = vector.shape_cast %31 : vector<128xf32> to vector<1x128xf32>
      %33 = arith.addf %29, %32 : vector<1x128xf32>
      %c0_11 = arith.constant 0 : index
      %c0_12 = arith.constant 0 : index
      %34 = vector.load %arg7[%c0_11, %c0_12] : memref<1x128xf32, #tpu.memory_space<vmem>>, vector<1x128xf32>
      tpu.vector_store %arg7[%c0_11, %c0_12], %33 {strides = array<i32>} : memref<1x128xf32, #tpu.memory_space<vmem>>, vector<1x128xf32>,
    } else {
    }
    %c2_i32 = arith.constant 2 : i32
    %6 = arith.cmpi eq, %arg0, %c2_i32 : i32
    %7 = arith.extui %6 : i1 to i32
    %cst_2 = arith.constant 7.812500e-03 : f32
    %c0_i32_3 = arith.constant 0 : i32
    %8 = arith.cmpi ne, %7, %c0_i32_3 : i32
    scf.if %8 {
      %c48_i32 = arith.constant 48 : i32
      %9 = arith.muli %arg1, %c48_i32 : i32
      %10 = tpu.assume_multiple %9, 48 : i32
      %11 = arith.index_cast %10 : i32 to index
      %c0 = arith.constant 0 : index
      %12 = vector.load %arg8[%11, %c0] : memref<144x128xbf16, #tpu.memory_space<vmem>>, vector<48x128xbf16>
      %13 = arith.extf %12 : vector<48x128xbf16> to vector<48x128xf32>
      %c0_4 = arith.constant 0 : index
      %c0_5 = arith.constant 0 : index
      %14 = vector.load %arg6[%c0_4, %c0_5] : memref<1x128xf32, #tpu.memory_space<vmem>>, vector<1x128xf32>
      %15 = vector.broadcast %cst_2 : f32 to vector<1x128xf32>
      %16 = arith.mulf %14, %15 : vector<1x128xf32>
      %c0_6 = arith.constant 0 : index
      %c0_7 = arith.constant 0 : index
      %17 = vector.load %arg7[%c0_6, %c0_7] : memref<1x128xf32, #tpu.memory_space<vmem>>, vector<1x128xf32>
      %18 = vector.broadcast %cst_2 : f32 to vector<1x128xf32>
      %19 = arith.mulf %17, %18 : vector<1x128xf32>
      %cst_8 = arith.constant 9.99999974E-6 : f32
      %20 = vector.broadcast %cst_8 : f32 to vector<1x128xf32>
      %21 = arith.addf %19, %20 : vector<1x128xf32>
      %22 = math.rsqrt %21 : vector<1x128xf32>
      %c1 = arith.constant 1 : index
      %c0_9 = arith.constant 0 : index
      %23 = vector.load %arg4[%c1, %c0_9] : memref<8x128xf32, #tpu.memory_space<vmem>>, vector<1x128xf32>
      %24 = arith.mulf %22, %23 : vector<1x128xf32>
      %c2 = arith.constant 2 : index
      %c0_10 = arith.constant 0 : index
      %25 = vector.load %arg4[%c2, %c0_10] : memref<8x128xf32, #tpu.memory_space<vmem>>, vector<1x128xf32>
      %26 = arith.mulf %16, %24 : vector<1x128xf32>
      %27 = arith.subf %25, %26 : vector<1x128xf32>
      %28 = vector.broadcast %24 : vector<1x128xf32> to vector<48x128xf32>
      %29 = arith.mulf %13, %28 : vector<48x128xf32>
      %30 = vector.broadcast %27 : vector<1x128xf32> to vector<48x128xf32>
      %31 = arith.addf %29, %30 : vector<48x128xf32>
      %32 = arith.truncf %31 : vector<48x128xf32> to vector<48x128xbf16>
      %c0_11 = arith.constant 0 : index
      %c0_12 = arith.constant 0 : index
      %33 = vector.load %arg5[%c0_11, %c0_12] : memref<48x128xbf16, #tpu.memory_space<vmem>>, vector<48x128xbf16>
      tpu.vector_store %arg5[%c0_11, %c0_12], %32 {strides = array<i32>} : memref<48x128xbf16, #tpu.memory_space<vmem>>, vector<48x128xbf16>,
    } else {
    }
    return
  }
  func.func @transform_0(%arg0: i32, %arg1: i32) -> (i32, i32) {
    %c0_i32 = arith.constant 0 : i32
    %0 = arith.cmpi eq, %arg0, %c0_i32 : i32
    %c0_i32_0 = arith.constant 0 : i32
    %1 = arith.select %0, %arg1, %c0_i32_0 : i32
    %c0_i32_1 = arith.constant 0 : i32
    %c0_i32_2 = arith.constant 0 : i32
    return %1, %c0_i32_1 : i32, i32
  }
  func.func @transform_1(%arg0: i32, %arg1: i32) -> (i32, i32) {
    %c0_i32 = arith.constant 0 : i32
    %c0_i32_0 = arith.constant 0 : i32
    %c0_i32_1 = arith.constant 0 : i32
    return %c0_i32, %c0_i32_0 : i32, i32
  }
  func.func @transform_2(%arg0: i32, %arg1: i32) -> (i32, i32) {
    %c0_i32 = arith.constant 0 : i32
    %c0_i32_0 = arith.constant 0 : i32
    %c0_i32_1 = arith.constant 0 : i32
    return %c0_i32, %c0_i32_0 : i32, i32
  }
  func.func @transform_3(%arg0: i32, %arg1: i32) -> (i32, i32) {
    %c2_i32 = arith.constant 2 : i32
    %0 = arith.cmpi eq, %arg0, %c2_i32 : i32
    %c0_i32 = arith.constant 0 : i32
    %1 = arith.select %0, %arg1, %c0_i32 : i32
    %c0_i32_0 = arith.constant 0 : i32
    %c0_i32_1 = arith.constant 0 : i32
    return %1, %c0_i32_0 : i32, i32
  }
}

</mosaic_0001>

<llo_original>
// kernel: tpu_custom_call.1
$region0: #{tpu_custom_call.1}
  #allocation0 [shape = 'u32[]', space=smem, size = 0x4, offset = 0x4, fixed_abs, tag = 'smem constant byte address 0x4 - core index']
  #allocation1 [shape = 'u32[144,128]{1,0:T(1,128)}', space=vmem, size = 0x12000, scoped, tag = 'internal scratch']
  #allocation2 [shape = 'f32[1,128]{1,0:T(1,128)}', space=vmem, size = 0x200, scoped, tag = 'scratch operand']
  #allocation3 [shape = 'f32[1,128]{1,0:T(1,128)}', space=vmem, size = 0x200, scoped, tag = 'scratch operand']
  #allocation4 [shape = 'bf16[144,128]{1,0:T(16,128)(2,1)}', space=vmem, size = 0x9000, scoped, tag = 'scratch operand']
  %s0 = inlined_call_operand.hbm [shape: bf16[144,128], index: 0, kind: input, shape index: {}]
  %s1 = inlined_call_operand.hbm [shape: bf16[128,128], index: 1, kind: input, shape index: {}]
  %s2 = inlined_call_operand.hbm [shape: f32[8,128], index: 2, kind: input, shape index: {}]
  %s3 = inlined_call_operand.hbm [shape: bf16[144,128], index: 3, kind: output, shape index: {}]
  %s4 = sld [smem:[#allocation0]]
  $region73: #{tpu_custom_call.1} parent=0
    _
  %s6 = ssub.s32 1, %s4
  %s7 = scalar_select 0, %s6, %s4
  $region1: #{tpu_custom_call.1} parent=0
    #allocation5 [shape = 'u8[24576]{0}', space=vmem, size = 0x6000, scoped, tag = 'input window, operand 0']
    #allocation6 [shape = 's32[2]{0}', space=sflag, size = 0x8, scoped, tag = 'scoped memory for tpu_custom_call.1']
    #allocation7 [shape = 's32[2]{0}', space=sflag, size = 0x8, scoped, tag = 'scoped memory for tpu_custom_call.1']
    #allocation8 [shape = 'u8[32768]{0}', space=vmem, size = 0x8000, scoped, tag = 'input window, operand 1, single buffered']
    #allocation9 [shape = 's32[1]{0}', space=sflag, size = 0x4, scoped, tag = 'scoped memory for tpu_custom_call.1']
    #allocation10 [shape = 'u8[4096]{0}', space=vmem, size = 0x1000, scoped, tag = 'input window, operand 2, single buffered']
    #allocation11 [shape = 'u8[24576]{0}', space=vmem, size = 0x6000, scoped, tag = 'output window, operand 0']
    %8 = vsyncpa [#allocation6], 0
    %s9 = scalar_lea.sflag [#allocation6], 1
    %10 = vsyncpa %s9, 0
    %11 = vsyncpa [#allocation9], 0
    %12 = vsyncpa [#allocation7], 0
    %s13 = scalar_lea.sflag [#allocation7], 1
    %14 = vsyncpa %s13, 0
    loop: start=0, step=1, limit=11
    $region2: #{tpu_custom_call.1} parent=1 // loop_pre_header
      _
    $region3: #{tpu_custom_call.1} parent=1 // loop_header
      %s16 = sphi 0, %s20
      %p17 = scmp.ge.s32.totalorder %s16, 11
      %s23 = sphi 0, %s35
      %s24 = sphi 0, %s31
      %s25 = sphi 0, %s23
      %s26 = sphi 0, %s24
      %s27 = sphi 0, %s25
      %s28 = sphi 0, %s26
      %s42 = sphi 0, %s44
      %s45 = sphi 0, %s42
      %s46 = sphi 0, %s45
      %s62 = sphi 0, %s46
      %s66 = sphi 0, %s66
      %s68 = sphi 0, %s66
      %s69 = sphi 0, %s68
      %s83 = sphi 0, %s69
      %s87 = sphi 0, %s87
      %s89 = sphi 0, %s87
      %s90 = sphi 0, %s89
      %s104 = sphi 0, %s90
      %s114 = sphi 0, %s116
      %s117 = sphi 0, %s114
      %s118 = sphi 0, %s117
      %s134 = sphi 0, %s118
    $region4: #{tpu_custom_call.1} parent=1 // loop_header_branch
      %19 = sbr.rel (%p17) target = $region8
    $region5: #{tpu_custom_call.1} parent=1 // loop_body
      %s21 = ssub.s32 %s16, 1
      %s22 = ssub.s32 %s16, 2
      %s29 = sadd.s32 1, %s24
      %p30 = scmp.ge.s32.totalorder %s29, 3
      %s31 = scalar_select %p30, 0, %s29
      %s32 = sadd.s32 1, %s23
      %s33 = scalar_select %p30, %s32, %s23
      %p34 = scmp.ge.s32.totalorder %s33, 3
      %s35 = scalar_select %p34, 0, %s33
      %p36 = scmp.eq.s32.totalorder %s23, 0
      %s37 = scalar_select %p36, %s24, 0
      %p38 = scmp.eq.s32.totalorder %s35, 0
      %s39 = scalar_select %p38, %s31, 0
      %s40 = ssub.s32 %s37, %s39
      %p41 = scmp.eq.s32.totalorder %s40, 0
      %s43 = sadd.s32 %s42, 1
      %s44 = scalar_select %p41, %s42, %s43
      %p47 = pneg %p41
      %p48 = scmp.eq.s32.totalorder %s16, 8
      %p49 = por %p47, %p48
      %p50 = scmp.ne.s32.totalorder %s42, %s45
      %p51 = scmp.eq.s32.totalorder %s16, 0
      %p52 = por %p50, %p51
      %p53 = scmp.ne.s32.totalorder %s42, %s45
      %p54 = scmp.eq.s32.totalorder %s21, 8
      %p55 = por %p53, %p54
      %p56 = scmp.ne.s32.totalorder %s45, %s46
      %p57 = scmp.eq.s32.totalorder %s21, 0
      %p58 = por %p56, %p57
      %p59 = scmp.ne.s32.totalorder %s45, %s46
      %p60 = scmp.eq.s32.totalorder %s22, 8
      %p61 = por %p59, %p60
      %p63 = scmp.ne.s32.totalorder %s46, %s62
      %p64 = scmp.eq.s32.totalorder %s22, 0
      %p65 = por %p63, %p64
      %s67 = sadd.s32 %s66, 1
      %p70 = scmp.eq.s32.totalorder %s16, 8
      %p71 = scmp.ne.s32.totalorder %s66, %s68
      %p72 = scmp.eq.s32.totalorder %s16, 0
      %p73 = por %p71, %p72
      %p74 = scmp.ne.s32.totalorder %s66, %s68
      %p75 = scmp.eq.s32.totalorder %s21, 8
      %p76 = por %p74, %p75
      %p77 = scmp.ne.s32.totalorder %s68, %s69
      %p78 = scmp.eq.s32.totalorder %s21, 0
      %p79 = por %p77, %p78
      %p80 = scmp.ne.s32.totalorder %s68, %s69
      %p81 = scmp.eq.s32.totalorder %s22, 8
      %p82 = por %p80, %p81
      %p84 = scmp.ne.s32.totalorder %s69, %s83
      %p85 = scmp.eq.s32.totalorder %s22, 0
      %p86 = por %p84, %p85
      %s88 = sadd.s32 %s87, 1
      %p91 = scmp.eq.s32.totalorder %s16, 8
      %p92 = scmp.ne.s32.totalorder %s87, %s89
      %p93 = scmp.eq.s32.totalorder %s16, 0
      %p94 = por %p92, %p93
      %p95 = scmp.ne.s32.totalorder %s87, %s89
      %p96 = scmp.eq.s32.totalorder %s21, 8
      %p97 = por %p95, %p96
      %p98 = scmp.ne.s32.totalorder %s89, %s90
      %p99 = scmp.eq.s32.totalorder %s21, 0
      %p100 = por %p98, %p99
      %p101 = scmp.ne.s32.totalorder %s89, %s90
      %p102 = scmp.eq.s32.totalorder %s22, 8
      %p103 = por %p101, %p102
      %p105 = scmp.ne.s32.totalorder %s90, %s104
      %p106 = scmp.eq.s32.totalorder %s22, 0
      %p107 = por %p105, %p106
      %p108 = scmp.eq.s32.totalorder %s23, 2
      %s109 = scalar_select %p108, %s24, 0
      %p110 = scmp.eq.s32.totalorder %s35, 2
      %s111 = scalar_select %p110, %s31, 0
      %s112 = ssub.s32 %s109, %s111
      %p113 = scmp.eq.s32.totalorder %s112, 0
      %s115 = sadd.s32 %s114, 1
      %s116 = scalar_select %p113, %s114, %s115
      %p119 = pneg %p113
      %p120 = scmp.eq.s32.totalorder %s16, 8
      %p121 = por %p119, %p120
      %p122 = scmp.ne.s32.totalorder %s114, %s117
      %p123 = scmp.eq.s32.totalorder %s16, 0
      %p124 = por %p122, %p123
      %p125 = scmp.ne.s32.totalorder %s114, %s117
      %p126 = scmp.eq.s32.totalorder %s21, 8
      %p127 = por %p125, %p126
      %p128 = scmp.ne.s32.totalorder %s117, %s118
      %p129 = scmp.eq.s32.totalorder %s21, 0
      %p130 = por %p128, %p129
      %p131 = scmp.ne.s32.totalorder %s117, %s118
      %p132 = scmp.eq.s32.totalorder %s22, 8
      %p133 = por %p131, %p132
      %p135 = scmp.ne.s32.totalorder %s118, %s134
      %p136 = scmp.eq.s32.totalorder %s22, 0
      %p137 = por %p135, %p136
      %p138 = scmp.le.s32.totalorder 1, %s16
      %p139 = scmp.lt.s32.totalorder %s16, 10
      %p140 = pnand %p138, %p139
      %p141 = pneg %p140
      // Predicated region
      $region9: #{tpu_custom_call.1} parent=5 // pred_check
        _
      $region10: #{tpu_custom_call.1} parent=5 // pred_check_branch
        %143 = sbr.rel (%p140) target = $region12
      $region11: #{tpu_custom_call.1} parent=5 // pred_region
        %s144 = ssub.s32 %s16, 1
        // Predicated region
        $region13: #{tpu_custom_call.1} parent=11 // pred_check
          %p145 = pneg %p79
        $region14: #{tpu_custom_call.1} parent=11 // pred_check_branch
          %147 = sbr.rel (%p145) target = $region16
        $region15: #{tpu_custom_call.1} parent=11 // pred_region
          %s149 = ssub.s32 1024, 1024
          %150 = vsyncadd [#allocation9], %s149
          %s151 = sshll.u32 [#allocation8], 4
          %s152 = int_to_ptr.vmem [resolvable:$true] %s151
          %157 = dma.hbm_to_vmem [thread:$0]  %s1, 1024, %s152, [#allocation9], 64, 64, 4
        $region16: #{tpu_custom_call.1} parent=11 // pred_fallthru
          _
        // Predicated region
        $region17: #{tpu_custom_call.1} parent=11 // pred_check
          %p158 = pneg %p100
        $region18: #{tpu_custom_call.1} parent=11 // pred_check_branch
          %160 = sbr.rel (%p158) target = $region20
        $region19: #{tpu_custom_call.1} parent=11 // pred_region
          %s162 = ssub.s32 128, 128
          %163 = vsyncadd [#allocation9], %s162
          %s165 = sshll.u32 [#allocation10], 4
          %s166 = int_to_ptr.vmem [resolvable:$true] %s165
          %168 = dma.hbm_to_vmem [thread:$0]  %s2, 128, %s166, [#allocation9]
        $region20: #{tpu_custom_call.1} parent=11 // pred_fallthru
          _
      $region12: #{tpu_custom_call.1} parent=5 // pred_fallthru
        _
      %p169 = scmp.lt.s32.totalorder %s16, 9
      // Predicated region
      $region21: #{tpu_custom_call.1} parent=5 // pred_check
        %p170 = pneg %p169
      $region22: #{tpu_custom_call.1} parent=5 // pred_check_branch
        %172 = sbr.rel (%p170) target = $region24
      $region23: #{tpu_custom_call.1} parent=5 // pred_region
        // Predicated region
        $region25: #{tpu_custom_call.1} parent=23 // pred_check
          %p173 = pneg %p52
        $region26: #{tpu_custom_call.1} parent=23 // pred_check_branch
          %175 = sbr.rel (%p173) target = $region28
        $region27: #{tpu_custom_call.1} parent=23 // pred_region
          %s176 = sand.u32 %s42, 1
          %s177 = scalar_lea.sflag [#allocation6], %s176
          %s178 = sand.u32 %s42, 1
          %s179 = smul.addr %s178, 24
          %s180 = scalar_lea.vmem [#allocation5], %s179
          %p181 = scmp.eq.s32.totalorder %s23, 0
          %s182 = scalar_select %p181, %s24, 0
          %s183 = smul.u32 6, %s182
          %s185 = ssub.s32 384, 384
          %186 = vsyncadd %s177, %s185
          %s187 = smul.addr %s183, 64
          %s188 = scalar_lea.hbm %s0, %s187
          %s189 = sshll.u32 %s180, 4
          %s190 = int_to_ptr.vmem [resolvable:$true] %s189
          %195 = dma.hbm_to_vmem [thread:$0]  %s188, 384, %s190, %s177, 64, 64, 4
        $region28: #{tpu_custom_call.1} parent=23 // pred_fallthru
          _
      $region24: #{tpu_custom_call.1} parent=5 // pred_fallthru
        _
      %p196 = scmp.le.s32.totalorder 1, %s16
      %p197 = scmp.lt.s32.totalorder %s16, 10
      %p198 = pnand %p196, %p197
      %p199 = pneg %p198
      // Predicated region
      $region29: #{tpu_custom_call.1} parent=5 // pred_check
        _
      $region30: #{tpu_custom_call.1} parent=5 // pred_check_branch
        %201 = sbr.rel (%p198) target = $region32
      $region31: #{tpu_custom_call.1} parent=5 // pred_region
        %s202 = ssub.s32 %s16, 1
        %s203 = sand.u32 %s45, 1
        %s204 = scalar_lea.sflag [#allocation6], %s203
        %s205 = sand.u32 %s45, 1
        %s206 = smul.addr %s205, 24
        %s207 = scalar_lea.vmem [#allocation5], %s206
        // Predicated region
        $region33: #{tpu_custom_call.1} parent=31 // pred_check
          %p208 = pneg %p58
        $region34: #{tpu_custom_call.1} parent=31 // pred_check_branch
          %210 = sbr.rel (%p208) target = $region36
        $region35: #{tpu_custom_call.1} parent=31 // pred_region
          %211 = dma.done %s204, 384
        $region36: #{tpu_custom_call.1} parent=31 // pred_fallthru
          _
        // Predicated region
        $region37: #{tpu_custom_call.1} parent=31 // pred_check
          %p212 = pneg %p79
        $region38: #{tpu_custom_call.1} parent=31 // pred_check_branch
          %214 = sbr.rel (%p212) target = $region40
        $region39: #{tpu_custom_call.1} parent=31 // pred_region
          %215 = dma.done [#allocation9], 1024
        $region40: #{tpu_custom_call.1} parent=31 // pred_fallthru
          _
        // Predicated region
        $region41: #{tpu_custom_call.1} parent=31 // pred_check
          %p216 = pneg %p100
        $region42: #{tpu_custom_call.1} parent=31 // pred_check_branch
          %218 = sbr.rel (%p216) target = $region44
        $region43: #{tpu_custom_call.1} parent=31 // pred_region
          %219 = dma.done [#allocation9], 128
        $region44: #{tpu_custom_call.1} parent=31 // pred_fallthru
          _
        %s220 = sand.u32 %s45, 1
        %s221 = scalar_lea.sflag [#allocation6], %s220
        %s222 = sand.u32 %s45, 1
        %s223 = smul.addr %s222, 24
        %s224 = scalar_lea.vmem [#allocation5], %s223
        %p225 = pneg %p58
        %p226 = pneg %p55
        %p227 = pneg %p79
        %p228 = pneg %p76
        %p229 = pneg %p100
        %p230 = pneg %p97
        %p231 = pneg %p130
        %p232 = pneg %p127
        %s233 = sand.u32 %s117, 1
        %s234 = scalar_lea.sflag [#allocation7], %s233
        %s235 = sand.u32 %s117, 1
        %s236 = smul.addr %s235, 24
        %s237 = scalar_lea.vmem [#allocation11], %s236
        %p238 = scmp.eq.s32.totalorder %s25, 0
        %s239 = scalar_select %p238, %s26, 0
        %s240 = smul.u32 6, %s239
        %p241 = scmp.eq.s32.totalorder %s25, 2
        %s242 = scalar_select %p241, %s26, 0
        %s243 = smul.u32 6, %s242
        %p245 = scmp.eq.s32.totalorder %s25, 0
        // Predicated region
        $region45: #{tpu_custom_call.1} parent=31 // pred_check
          %p246 = pneg %p245
        $region46: #{tpu_custom_call.1} parent=31 // pred_check_branch
          %248 = sbr.rel (%p246) target = $region48
        $region47: #{tpu_custom_call.1} parent=31 // pred_region
          %v249 = vld [vmem:[%s207] sm:$0xf]
          %v250 = vld [vmem:[%s207 + $0x4] sm:$0xf]
          %v251 = vld [vmem:[%s207 + $0x8] sm:$0xf]
          %v252 = vld [vmem:[%s207 + $0xc] sm:$0xf]
          %v253 = vld [vmem:[%s207 + $0x10] sm:$0xf]
          %v254 = vld [vmem:[%s207 + $0x14] sm:$0xf]
          %v255 = vld [vmem:[#allocation8] sm:$0xf]
          %v256 = vld [vmem:[#allocation8 + $0x4] sm:$0xf]
          %v257 = vld [vmem:[#allocation8 + $0x8] sm:$0xf]
          %v258 = vld [vmem:[#allocation8 + $0xc] sm:$0xf]
          %v259 = vld [vmem:[#allocation8 + $0x10] sm:$0xf]
          %v260 = vld [vmem:[#allocation8 + $0x14] sm:$0xf]
          %v261 = vld [vmem:[#allocation8 + $0x18] sm:$0xf]
          %v262 = vld [vmem:[#allocation8 + $0x1c] sm:$0xf]
          %v263 = vld [vmem:[#allocation8 + $0x20] sm:$0xf]
          %v264 = vld [vmem:[#allocation8 + $0x24] sm:$0xf]
          %v265 = vld [vmem:[#allocation8 + $0x28] sm:$0xf]
          %v266 = vld [vmem:[#allocation8 + $0x2c] sm:$0xf]
          %v267 = vld [vmem:[#allocation8 + $0x30] sm:$0xf]
          %v268 = vld [vmem:[#allocation8 + $0x34] sm:$0xf]
          %v269 = vld [vmem:[#allocation8 + $0x38] sm:$0xf]
          %v270 = vld [vmem:[#allocation8 + $0x3c] sm:$0xf]
          %v277 = vunpack.c.l.b16 %v249
          %v278 = vunpack.c.l.b16 %v250
          %v279 = vunpack.c.l.b16 %v251
          %v280 = vunpack.c.l.b16 %v252
          %v281 = vunpack.c.l.b16 %v253
          %v282 = vunpack.c.l.b16 %v254
          %v283 = vpack.c.b16 %v278, %v277
          %v284 = vpack.c.b16 %v280, %v279
          %v285 = vpack.c.b16 %v282, %v281
          %v305 = vunpack.c.l.b16 %v255
          %v306 = vunpack.c.l.b16 %v256
          %v307 = vunpack.c.l.b16 %v257
          %v308 = vunpack.c.l.b16 %v258
          %v309 = vunpack.c.l.b16 %v259
          %v310 = vunpack.c.l.b16 %v260
          %v311 = vunpack.c.l.b16 %v261
          %v312 = vunpack.c.l.b16 %v262
          %v313 = vunpack.c.l.b16 %v263
          %v314 = vunpack.c.l.b16 %v264
          %v315 = vunpack.c.l.b16 %v265
          %v316 = vunpack.c.l.b16 %v266
          %v317 = vunpack.c.l.b16 %v267
          %v318 = vunpack.c.l.b16 %v268
          %v319 = vunpack.c.l.b16 %v269
          %v320 = vunpack.c.l.b16 %v270
          %v321 = vpack.c.b16 %v306, %v305
          %v322 = vpack.c.b16 %v308, %v307
          %v323 = vpack.c.b16 %v310, %v309
          %v324 = vpack.c.b16 %v312, %v311
          %v325 = vpack.c.b16 %v314, %v313
          %v326 = vpack.c.b16 %v316, %v315
          %v327 = vpack.c.b16 %v318, %v317
          %v328 = vpack.c.b16 %v320, %v319
          %337 = vmatprep.subr.bf16.mxu0 0
          %338 = vmatpush1.bf16.msra.mxu0 %v321
          %339 = vmatprep.subr.bf16.mxu0 0
          %340 = vmatpush1.bf16.msra.mxu0 %v322
          %341 = vmatprep.subr.bf16.mxu0 0
          %342 = vmatpush1.bf16.msra.mxu0 %v323
          %343 = vmatprep.subr.bf16.mxu0 0
          %344 = vmatpush1.bf16.msra.mxu0 %v324
          %345 = vmatprep.subr.bf16.mxu0 0
          %346 = vmatpush1.bf16.msra.mxu0 %v325
          %347 = vmatprep.subr.bf16.mxu0 0
          %348 = vmatpush1.bf16.msra.mxu0 %v326
          %349 = vmatprep.subr.bf16.mxu0 0
          %350 = vmatpush1.bf16.msra.mxu0 %v327
          %351 = vmatprep.subr.bf16.mxu0 0
          %352 = vmatpush1.bf16.msra.mxu0 %v328
          %353 = vmatprep.subr.bf16.mxu0 0
          %354 = vmatpush1.bf16.msra.mxu0 0
          %355 = vmatprep.subr.bf16.mxu0 0
          %356 = vmatpush1.bf16.msra.mxu0 0
          %357 = vmatprep.subr.bf16.mxu0 0
          %358 = vmatpush1.bf16.msra.mxu0 0
          %359 = vmatprep.subr.bf16.mxu0 0
          %360 = vmatpush1.bf16.msra.mxu0 0
          %361 = vmatprep.subr.bf16.mxu0 0
          %362 = vmatpush1.bf16.msra.mxu0 0
          %363 = vmatprep.subr.bf16.mxu0 0
          %364 = vmatpush1.bf16.msra.mxu0 0
          %365 = vmatprep.subr.bf16.mxu0 0
          %366 = vmatpush1.bf16.msra.mxu0 0
          %367 = vmatprep.subr.bf16.mxu0 0
          %368 = vmatpush1.bf16.msra.mxu0 0
          %369 = vmatprep.mubr.bf16.mxu0 0
          %370 = vmatmul.mubr.bf16.gmra.mrb[0].mxu0 %v283
          %v371 = vpop.f32.mrb[0].mxu0
          %v372 = vadd.f32 0.0, %v371
          %v373 = vpop.f32.mrb[0].mxu0
          %v374 = vpop.f32.mrb[0].mxu0
          %v375 = vadd.f32 0.0, %v374
          %v376 = vpop.f32.mrb[0].mxu0
          %377 = vmatprep.mubr.bf16.mxu0 0
          %378 = vmatmul.mubr.bf16.gmra.mrb[0].mxu0 %v284
          %v379 = vpop.f32.mrb[0].mxu0
          %v380 = vadd.f32 0.0, %v379
          %v381 = vpop.f32.mrb[0].mxu0
          %v382 = vpop.f32.mrb[0].mxu0
          %v383 = vadd.f32 0.0, %v382
          %v384 = vpop.f32.mrb[0].mxu0
          %385 = vmatprep.mubr.bf16.mxu0 0
          %386 = vmatmul.mubr.bf16.gmra.mrb[0].mxu0 %v285
          %v387 = vpop.f32.mrb[0].mxu0
          %v388 = vadd.f32 0.0, %v387
          %v389 = vpop.f32.mrb[0].mxu0
          %v390 = vpop.f32.mrb[0].mxu0
          %v391 = vadd.f32 0.0, %v390
          %v392 = vpop.f32.mrb[0].mxu0
          %393 = vdwg.mxu0
          %vm394 = vcmp.ge.f32.partialorder %v372, 0.0
          %vm395 = vcmp.ge.f32.partialorder %v375, 0.0
          %vm396 = vcmp.ge.f32.partialorder %v380, 0.0
          %vm397 = vcmp.ge.f32.partialorder %v383, 0.0
          %vm398 = vcmp.ge.f32.partialorder %v388, 0.0
          %vm399 = vcmp.ge.f32.partialorder %v391, 0.0
          %v400 = vmul.f32 %v372, 0.2
          %v401 = vmul.f32 %v375, 0.2
          %v402 = vmul.f32 %v380, 0.2
          %v403 = vmul.f32 %v383, 0.2
          %v404 = vmul.f32 %v388, 0.2
          %v405 = vmul.f32 %v391, 0.2
          %v406 = vsel %vm394, %v372, %v400
          %v407 = vsel %vm395, %v375, %v401
          %v408 = vsel %vm396, %v380, %v402
          %v409 = vsel %vm397, %v383, %v403
          %v410 = vsel %vm398, %v388, %v404
          %v411 = vsel %vm399, %v391, %v405
          %p412 = scmp.eq.s32.totalorder %s26, 0
          // Predicated region
          $region49: #{tpu_custom_call.1} parent=47 // pred_check
            %p413 = pneg %p412
          $region50: #{tpu_custom_call.1} parent=47 // pred_check_branch
            %415 = sbr.rel (%p413) target = $region52
          $region51: #{tpu_custom_call.1} parent=47 // pred_region
            %416 = vst [vmem:[#allocation2] sm:$0x1] 0.0
            %417 = vst [vmem:[#allocation3] sm:$0x1] 0.0
          $region52: #{tpu_custom_call.1} parent=47 // pred_fallthru
            _
          %v418 = vld [vmem:[#allocation2] sm:$0x1]
          %v419 = vadd.f32 %v406, %v407
          %v420 = vadd.f32 %v419, %v408
          %v421 = vadd.f32 %v420, %v409
          %v422 = vadd.f32 %v421, %v410
          %v423 = vadd.f32 %v422, %v411
          %v424 = vrot.slane %v423, 4
          %v425 = vadd.f32 %v423, %v424
          %v426 = vrot.slane %v425, 2
          %v427 = vadd.f32 %v425, %v426
          %v428 = vrot.slane %v427, 1
          %v429 = vadd.f32 %v427, %v428
          %v430 = vadd.f32 %v418, %v429
          %431 = vst [vmem:[#allocation2] sm:$0x1] %v430
          %s432 = smul.u32 %s26, 48
          %v433 = vpack.c.bf16 %v407, %v406
          %v434 = vpack.c.bf16 %v409, %v408
          %v435 = vpack.c.bf16 %v411, %v410
          %s436 = sshra.s32 %s432, 4
          %s437 = sand.u32 %s432, 15
          %s438 = smul.addr %s436, 8
          %s439 = scalar_lea.vmem [#allocation4], %s438
          %440 = vst [vmem:[%s439] sm:$0xff] %v433
          %441 = vst [vmem:[%s439 + $0x8] sm:$0xff] %v434
          %442 = vst [vmem:[%s439 + $0x10] sm:$0xff] %v435
        $region48: #{tpu_custom_call.1} parent=31 // pred_fallthru
          _
        %p443 = scmp.eq.s32.totalorder %s25, 1
        // Predicated region
        $region53: #{tpu_custom_call.1} parent=31 // pred_check
          %p444 = pneg %p443
        $region54: #{tpu_custom_call.1} parent=31 // pred_check_branch
          %446 = sbr.rel (%p444) target = $region56
        $region55: #{tpu_custom_call.1} parent=31 // pred_region
          %s447 = smul.u32 %s26, 48
          %s448 = sshra.s32 %s447, 4
          %s449 = sand.u32 %s447, 15
          %s450 = smul.addr %s448, 8
          %s451 = scalar_lea.vmem [#allocation4], %s450
          %v452 = vld [vmem:[%s451] sm:$0xff]
          %v453 = vld [vmem:[%s451 + $0x8] sm:$0xff]
          %v454 = vld [vmem:[%s451 + $0x10] sm:$0xff]
          %v455 = vunpack.c.l.bf16 %v452
          %v456 = vunpack.c.h.bf16 %v452
          %v457 = vunpack.c.l.bf16 %v453
          %v458 = vunpack.c.h.bf16 %v453
          %v459 = vunpack.c.l.bf16 %v454
          %v460 = vunpack.c.h.bf16 %v454
          %v461 = vld [vmem:[#allocation2] sm:$0x1]
          %v462 = vmul.f32 %v461, 0.0078125
          %v464 = vlaneseq
          %v465 = vshrl.u32 %v464, 7
          %v466 = vsub.s32 0, %v465
          %v467 = vrot.slane %v462, %v466
          %v469 = vsub.f32 %v455, %v467
          %v470 = vsub.f32 %v456, %v467
          %v471 = vsub.f32 %v457, %v467
          %v472 = vsub.f32 %v458, %v467
          %v473 = vsub.f32 %v459, %v467
          %v474 = vsub.f32 %v460, %v467
          %v475 = vlaneseq
          %v476 = vshrl.u32 %v475, 7
          %v477 = vadd.s32 %v476, 8
          %v478 = vadd.s32 %v476, 16
          %v479 = vadd.s32 %v476, 24
          %v480 = vadd.s32 %v476, 32
          %v481 = vadd.s32 %v476, 40
          %v482 = vstv %s447
          %v483 = vadd.s32 %v482, %v476
          %v484 = vadd.s32 %v482, %v477
          %v485 = vadd.s32 %v482, %v478
          %v486 = vadd.s32 %v482, %v479
          %v487 = vadd.s32 %v482, %v480
          %v488 = vadd.s32 %v482, %v481
          %vm489 = vcmp.lt.s32.totalorder %v483, 128
          %vm490 = vcmp.lt.s32.totalorder %v484, 128
          %vm491 = vcmp.lt.s32.totalorder %v485, 128
          %vm492 = vcmp.lt.s32.totalorder %v486, 128
          %vm493 = vcmp.lt.s32.totalorder %v487, 128
          %vm494 = vcmp.lt.s32.totalorder %v488, 128
          %v495 = vsel %vm489, 1, 0
          %v496 = vsel %vm490, 1, 0
          %v497 = vsel %vm491, 1, 0
          %v498 = vsel %vm492, 1, 0
          %v499 = vsel %vm493, 1, 0
          %v500 = vsel %vm494, 1, 0
          %vm501 = vcmp.eq.s32.totalorder %v495, 1
          %vm502 = vcmp.eq.s32.totalorder %v496, 1
          %vm503 = vcmp.eq.s32.totalorder %v497, 1
          %vm504 = vcmp.eq.s32.totalorder %v498, 1
          %vm505 = vcmp.eq.s32.totalorder %v499, 1
          %vm506 = vcmp.eq.s32.totalorder %v500, 1
          %v507 = vsel %vm501, %v469, 0.0
          %v508 = vsel %vm502, %v470, 0.0
          %v509 = vsel %vm503, %v471, 0.0
          %v510 = vsel %vm504, %v472, 0.0
          %v511 = vsel %vm505, %v473, 0.0
          %v512 = vsel %vm506, %v474, 0.0
          %v513 = vld [vmem:[#allocation3] sm:$0x1]
          %v514 = vmul.f32 %v507, %v507
          %v515 = vmul.f32 %v508, %v508
          %v516 = vmul.f32 %v509, %v509
          %v517 = vmul.f32 %v510, %v510
          %v518 = vmul.f32 %v511, %v511
          %v519 = vmul.f32 %v512, %v512
          %v520 = vadd.f32 %v514, %v515
          %v521 = vadd.f32 %v520, %v516
          %v522 = vadd.f32 %v521, %v517
          %v523 = vadd.f32 %v522, %v518
          %v524 = vadd.f32 %v523, %v519
          %v525 = vrot.slane %v524, 4
          %v526 = vadd.f32 %v524, %v525
          %v527 = vrot.slane %v526, 2
          %v528 = vadd.f32 %v526, %v527
          %v529 = vrot.slane %v528, 1
          %v530 = vadd.f32 %v528, %v529
          %v531 = vadd.f32 %v513, %v530
          %532 = vst [vmem:[#allocation3] sm:$0x1] %v531
        $region56: #{tpu_custom_call.1} parent=31 // pred_fallthru
          _
        %p533 = scmp.eq.s32.totalorder %s25, 2
        // Predicated region
        $region57: #{tpu_custom_call.1} parent=31 // pred_check
          %p534 = pneg %p533
        $region58: #{tpu_custom_call.1} parent=31 // pred_check_branch
          %536 = sbr.rel (%p534) target = $region60
        $region59: #{tpu_custom_call.1} parent=31 // pred_region
          %s537 = smul.u32 %s26, 48
          %s538 = sshra.s32 %s537, 4
          %s539 = sand.u32 %s537, 15
          %s540 = smul.addr %s538, 8
          %s541 = scalar_lea.vmem [#allocation4], %s540
          %v542 = vld [vmem:[%s541] sm:$0xff]
          %v543 = vld [vmem:[%s541 + $0x8] sm:$0xff]
          %v544 = vld [vmem:[%s541 + $0x10] sm:$0xff]
          %v545 = vunpack.c.l.bf16 %v542
          %v546 = vunpack.c.h.bf16 %v542
          %v547 = vunpack.c.l.bf16 %v543
          %v548 = vunpack.c.h.bf16 %v543
          %v549 = vunpack.c.l.bf16 %v544
          %v550 = vunpack.c.h.bf16 %v544
          %v551 = vld [vmem:[#allocation2] sm:$0x1]
          %v552 = vmul.f32 %v551, 0.0078125
          %v553 = vld [vmem:[#allocation3] sm:$0x1]
          %v554 = vmul.f32 %v553, 0.0078125
          %v555 = vadd.f32 %v554, 1e-05
          %v556 = vrsqrt.pop %v555
          %v557 = vld [vmem:[#allocation10 + $0x1] sm:$0x1]
          %v558 = vmul.f32 %v556, %v557
          %v559 = vld [vmem:[#allocation10 + $0x2] sm:$0x1]
          %v560 = vmul.f32 %v552, %v558
          %v561 = vsub.f32 %v559, %v560
          %v563 = vlaneseq
          %v564 = vshrl.u32 %v563, 7
          %v565 = vsub.s32 0, %v564
          %v566 = vrot.slane %v558, %v565
          %v568 = vmul.f32 %v545, %v566
          %v569 = vmul.f32 %v546, %v566
          %v570 = vmul.f32 %v547, %v566
          %v571 = vmul.f32 %v548, %v566
          %v572 = vmul.f32 %v549, %v566
          %v573 = vmul.f32 %v550, %v566
          %v574 = vlaneseq
          %v575 = vshrl.u32 %v574, 7
          %v576 = vsub.s32 0, %v575
          %v577 = vrot.slane %v561, %v576
          %v578 = vadd.f32 %v568, %v577
          %v579 = vadd.f32 %v569, %v577
          %v580 = vadd.f32 %v570, %v577
          %v581 = vadd.f32 %v571, %v577
          %v582 = vadd.f32 %v572, %v577
          %v583 = vadd.f32 %v573, %v577
          %v584 = vpack.c.bf16 %v579, %v578
          %v585 = vpack.c.bf16 %v581, %v580
          %v586 = vpack.c.bf16 %v583, %v582
          %v590 = vunpack.c.l.b16 %v584
          %v591 = vunpack.c.h.b16 %v584
          %v592 = vunpack.c.l.b16 %v585
          %v593 = vunpack.c.h.b16 %v585
          %v594 = vunpack.c.l.b16 %v586
          %v595 = vunpack.c.h.b16 %v586
          %v596 = vpack.c.b16 %v590, %v590
          %v597 = vpack.c.b16 %v591, %v591
          %v598 = vpack.c.b16 %v592, %v592
          %v599 = vpack.c.b16 %v593, %v593
          %v600 = vpack.c.b16 %v594, %v594
          %v601 = vpack.c.b16 %v595, %v595
          %608 = vst [vmem:[%s237] sm:$0xf] %v596
          %609 = vst [vmem:[%s237 + $0x4] sm:$0xf] %v597
          %610 = vst [vmem:[%s237 + $0x8] sm:$0xf] %v598
          %611 = vst [vmem:[%s237 + $0xc] sm:$0xf] %v599
          %612 = vst [vmem:[%s237 + $0x10] sm:$0xf] %v600
          %613 = vst [vmem:[%s237 + $0x14] sm:$0xf] %v601
        $region60: #{tpu_custom_call.1} parent=31 // pred_fallthru
          _
        %s614 = sand.u32 %s117, 1
        %s615 = scalar_lea.sflag [#allocation7], %s614
        %s616 = sand.u32 %s117, 1
        %s617 = smul.addr %s616, 24
        %s618 = scalar_lea.vmem [#allocation11], %s617
        // Predicated region
        $region61: #{tpu_custom_call.1} parent=31 // pred_check
          %p619 = pneg %p127
        $region62: #{tpu_custom_call.1} parent=31 // pred_check_branch
          %621 = sbr.rel (%p619) target = $region64
        $region63: #{tpu_custom_call.1} parent=31 // pred_region
          %p622 = scmp.eq.s32.totalorder %s25, 2
          %s623 = scalar_select %p622, %s26, 0
          %s624 = smul.u32 6, %s623
          %s626 = ssub.s32 384, 384
          %627 = vsyncadd %s615, %s626
          %s628 = smul.addr %s624, 64
          %s629 = scalar_lea.hbm %s3, %s628
          %s630 = sshll.u32 %s618, 4
          %s631 = int_to_ptr.vmem [resolvable:$true] %s630
          %636 = dma.vmem_to_hbm [thread:$0]  %s631, 384, %s629, %s615, 64, 64, 4
        $region64: #{tpu_custom_call.1} parent=31 // pred_fallthru
          _
      $region32: #{tpu_custom_call.1} parent=5 // pred_fallthru
        _
      %p637 = scmp.le.s32.totalorder 2, %s16
      // Predicated region
      $region65: #{tpu_custom_call.1} parent=5 // pred_check
        %p638 = pneg %p637
      $region66: #{tpu_custom_call.1} parent=5 // pred_check_branch
        %640 = sbr.rel (%p638) target = $region68
      $region67: #{tpu_custom_call.1} parent=5 // pred_region
        %s641 = ssub.s32 %s16, 2
        // Predicated region
        $region69: #{tpu_custom_call.1} parent=67 // pred_check
          %p642 = pneg %p133
        $region70: #{tpu_custom_call.1} parent=67 // pred_check_branch
          %644 = sbr.rel (%p642) target = $region72
        $region71: #{tpu_custom_call.1} parent=67 // pred_region
          %s645 = sand.u32 %s118, 1
          %s646 = scalar_lea.sflag [#allocation7], %s645
          %s647 = sand.u32 %s118, 1
          %s648 = smul.addr %s647, 24
          %s649 = scalar_lea.vmem [#allocation11], %s648
          %650 = dma.done %s646, 384
        $region72: #{tpu_custom_call.1} parent=67 // pred_fallthru
          _
      $region68: #{tpu_custom_call.1} parent=5 // pred_fallthru
        _
    $region6: #{tpu_custom_call.1} parent=1 // loop_footer
      %s20 = sadd.s32 1, %s16
    $region7: #{tpu_custom_call.1} parent=1 // loop_footer_branch
      %15 = sbr.rel target = $region3
    $region8: #{tpu_custom_call.1} parent=1 // loop_exit
      _
    %651 = vsyncpa [#allocation6], 1
    %s652 = scalar_lea.sflag [#allocation6], 1
    %653 = vsyncpa %s652, 1
    %654 = vsyncpa [#allocation9], 1
    %655 = vsyncpa [#allocation7], 1
    %s656 = scalar_lea.sflag [#allocation7], 1
    %657 = vsyncpa %s656, 1

</llo_original>
